<compile_context>
chip_gen: v7x
topology: tpu7x:2x2x1
jax: 0.10.0
libtpu: 0.0.40
codegen_flags: <defaults>
</compile_context>

<pallas_src>
import numpy as np
import jax
import jax.numpy as jnp
from jax.experimental import pallas as pl
from jax.experimental.pallas import tpu as pltpu


def _round_up(x, m):
    return ((x + m - 1) // m) * m


def _vf_triplets_kernel(xv_ref, xf_ref,
                        w1_ref, b1_ref, w2_ref, b2_ref, w3_ref, b3_ref,
                        out_ref):
    # Assemble the concatenated [voice | face1 | face2] tile in VMEM (both
    # pieces are 128-lane aligned -> cheap vreg placement, no lane shuffles)
    # and cast to the MXU compute dtype here, so the wrapper never makes an
    # extra HBM pass over the activations.
    x = jnp.concatenate([xv_ref[...], xf_ref[...]], axis=-1)
    x = x.astype(w1_ref.dtype)

    # fc1 + relu + MaxPool1d(2): ONE K=dim matmul.  W1 output columns are
    # pre-laid-out as [even | odd], so
    #   pool(relu(z))[:, j] = relu(max(z[:, j], z[:, H + j])).
    z1 = jnp.dot(x, w1_ref[...], preferred_element_type=jnp.float32) + b1_ref[...]
    H = z1.shape[1] // 2
    h = jnp.maximum(jnp.maximum(z1[:, :H], z1[:, H:]), 0.0)

    # BatchNorm1d (eval affine) + Dropout (identity in eval) are folded into
    # W2/b2 in the wrapper; only the compute-dtype cast remains here.
    h = h.astype(w2_ref.dtype)

    # fc2 (BN-folded, [even | odd] merged) + relu + MaxPool1d(2).
    z2 = jnp.dot(h, w2_ref[...], preferred_element_type=jnp.float32) + b2_ref[...]
    Q = z2.shape[1] // 2
    g = jnp.maximum(jnp.maximum(z2[:, :Q], z2[:, Q:]), 0.0)

    # fc3 (single output column): VPU multiply + XLU lane reduction instead of
    # driving a full MXU pass for N=1.
    out_ref[...] = jnp.sum(g * w3_ref[...], axis=-1, keepdims=True) + b3_ref[...]


def _linear_init(key, fan_in, fan_out):
    """Deterministic init matching torch.nn.Linear's U(-1/sqrt(fan_in), +1/sqrt(fan_in))."""
    kw, kb = jax.random.split(key)
    bound = 1.0 / np.sqrt(fan_in)
    w = jax.random.uniform(kw, (fan_in, fan_out), jnp.float32, -bound, bound)
    b = jax.random.uniform(kb, (fan_out,), jnp.float32, -bound, bound)
    return w, b


def make_params(key, input_sz_voice, input_sz_face, input_layer_size):
    dim = input_sz_voice + 2 * input_sz_face
    L = input_layer_size
    k1, k2, k3 = jax.random.split(key, 3)
    w1, b1 = _linear_init(k1, dim, L)          # fc1: dim -> L
    w2, b2 = _linear_init(k2, L // 2, L // 4)  # fc2: L/2 -> L/4
    w3, b3 = _linear_init(k3, L // 8, 1)       # fc3: L/8 -> 1
    # BatchNorm1d(L//2) defaults: gamma=1, beta=0, running_mean=0, running_var=1
    gamma = jnp.ones((L // 2,), jnp.float32)
    beta = jnp.zeros((L // 2,), jnp.float32)
    running_mean = jnp.zeros((L // 2,), jnp.float32)
    running_var = jnp.ones((L // 2,), jnp.float32)
    return dict(w1=w1, b1=b1, w2=w2, b2=b2, w3=w3, b3=b3,
                gamma=gamma, beta=beta, running_mean=running_mean,
                running_var=running_var, eps=1e-5)


def voice_face_triplets_forward(x_v, x_f1, x_f2, params, *,
                                tile_b=1024, compute_dtype=jnp.bfloat16):
    """Pallas forward (eval mode).  Weight preprocessing stays in plain JAX."""
    B, Dv = x_v.shape
    Df = x_f1.shape[1]
    dim = Dv + 2 * Df
    L = params["w1"].shape[1]
    assert params["w1"].shape[0] == dim
    assert L % 8 == 0  # even/odd pooling trick needs even fc1/fc2 output widths

    w1, b1 = params["w1"], params["b1"]
    w2, b2 = params["w2"], params["b2"]
    w3, b3 = params["w3"], params["b3"]

    # ---- weight preprocessing (tiny, done once; pure XLA glue) ----------------
    # Re-lay-out output columns as [even | odd] so MaxPool1d(2) after the linear
    # becomes a max of two contiguous, lane-aligned halves.
    w1m = jnp.concatenate([w1[:, 0::2], w1[:, 1::2]], axis=1)     # (dim, L)
    b1m = jnp.concatenate([b1[0::2], b1[1::2]])[None, :]          # (1, L)
    w2m = jnp.concatenate([w2[:, 0::2], w2[:, 1::2]], axis=1)     # (L/2, L/4)
    b2m = jnp.concatenate([b2[0::2], b2[1::2]])[None, :]          # (1, L/4)

    # Fold eval-mode BatchNorm1d into fc2 (valid because dropout is identity in
    # eval):  (h*scale + shift) @ W2 + b2 = h @ (scale[:,None]*W2) + (shift@W2 + b2)
    inv_std = 1.0 / jnp.sqrt(params["running_var"] + params["eps"])
    scale = params["gamma"] * inv_std
    shift = params["beta"] - params["running_mean"] * scale
    b2_fold = shift[None, :] @ w2m + b2m                          # (1, L/4)
    w2_fold = scale[:, None] * w2m                                # (L/2, L/4)

    w3_row = jnp.reshape(w3, (1, -1)).astype(jnp.float32)         # (1, L/8)
    b3_2d = jnp.reshape(b3, (1, 1)).astype(jnp.float32)           # (1, 1)

    # Compute-dtype cast for the weights only (one-time; activations are cast
    # inside the kernel so they make a single f32 HBM read, no extra pass).
    cd = compute_dtype
    w1m = w1m.astype(cd)
    w2_fold = w2_fold.astype(cd)
    b1m = b1m.astype(jnp.float32)
    b2_fold = b2_fold.astype(jnp.float32)

    # Pre-concatenate the two face embeddings so the in-kernel concat of the
    # voice and face halves lands on 128-lane (vreg) boundaries.
    x_f = jnp.concatenate([x_f1, x_f2], axis=1)                   # (B, 2*Df)

    # ---- batch tiling (no wrapper-side pad; last block may over-run) ----------
    tile_b = _round_up(max(int(tile_b), 8), 8)
    b_rounded = _round_up(B, 8)
    block_b = min(tile_b, b_rounded)
    # Keep >= 2 grid steps when possible so the "parallel" batch axis feeds
    # both TensorCores on v7x megacore (no-op on v5e/v6e single-TC chips).
    if b_rounded > 8 and block_b >= b_rounded:
        block_b = _round_up((B + 1) // 2, 8)
    grid = (int(pl.cdiv(B, block_b)),)

    def act_spec(d):
        return pl.BlockSpec((block_b, d), lambda i: (i, 0))

    def res_spec(shape):
        # Constant index_map -> DMA'd once, stays VMEM-resident across the grid.
        return pl.BlockSpec(shape, lambda i: (0, 0))

    out = pl.pallas_call(
        _vf_triplets_kernel,
        out_shape=jax.ShapeDtypeStruct((B, 1), jnp.float32),
        grid_spec=pltpu.PrefetchScalarGridSpec(
            num_scalar_prefetch=0,
            grid=grid,
            in_specs=[
                act_spec(Dv), act_spec(2 * Df),
                res_spec((dim, L)), res_spec((1, L)),
                res_spec((L // 2, L // 4)), res_spec((1, L // 4)),
                res_spec((1, L // 8)), res_spec((1, 1)),
            ],
            out_specs=pl.BlockSpec((block_b, 1), lambda i: (i, 0)),
        ),
        compiler_params=pltpu.CompilerParams(
            dimension_semantics=("parallel",),      # 2x on v7x megacore
            vmem_limit_bytes=32 * 1024 * 1024,      # 1024-row tiles fit v5e too
        ),
    )(x_v, x_f, w1m, b1m, w2_fold, b2_fold, w3_row, b3_2d)

    return out


def reference_forward(x_v, x_f1, x_f2, params):
    """Pure-JAX mirror of the PyTorch forward (eval mode) for verification."""
    x = jnp.concatenate([x_v, x_f1, x_f2], axis=1).astype(jnp.float32)
    B = x.shape[0]
    h = jnp.maximum(x @ params["w1"] + params["b1"], 0.0)
    h = jnp.max(h.reshape(B, -1, 2), axis=-1)                      # MaxPool1d(2)
    h = ((h - params["running_mean"]) / jnp.sqrt(params["running_var"] + params["eps"])
         * params["gamma"] + params["beta"])                       # BatchNorm1d (eval)
    g = jnp.maximum(h @ params["w2"] + params["b2"], 0.0)
    g = jnp.max(g.reshape(B, -1, 2), axis=-1)                      # MaxPool1d(2)
    return g @ params["w3"] + params["b3"]


if __name__ == "__main__":
    B = 8
    input_sz_voice = 128
    input_sz_face = 64
    cfg = {"input_layer_size": 512, "dropout": 0.25}  # dropout inactive in eval mode

    key = jax.random.PRNGKey(0)
    k_v, k_f1, k_f2, k_p = jax.random.split(key, 4)
    x_v = jax.random.normal(k_v, (B, input_sz_voice), jnp.float32)
    x_f1 = jax.random.normal(k_f1, (B, input_sz_face), jnp.float32)
    x_f2 = jax.random.normal(k_f2, (B, input_sz_face), jnp.float32)

    params = make_params(k_p, input_sz_voice, input_sz_face, cfg["input_layer_size"])
    ref = jax.block_until_ready(reference_forward(x_v, x_f1, x_f2, params))

    # f32 compute path: tight tolerance against the f32 reference.
    out_f32 = jax.block_until_ready(
        voice_face_triplets_forward(x_v, x_f1, x_f2, params,
                                    compute_dtype=jnp.float32))
    np.testing.assert_allclose(np.asarray(out_f32), np.asarray(ref),
                               rtol=1e-3, atol=1e-3)

    # Default bf16 compute path: looser tolerance (bf16 operand quantization).
    out_bf16 = jax.block_until_ready(
        voice_face_triplets_forward(x_v, x_f1, x_f2, params))
    np.testing.assert_allclose(np.asarray(out_bf16), np.asarray(ref),
                               rtol=5e-2, atol=5e-2)

    # Ragged batch exercises the pad-free partial-block path (2 grid steps; the
    # last block over-runs and its out-of-range rows are never written back).
    Bo = 13
    xv2 = jax.random.normal(jax.random.PRNGKey(1), (Bo, input_sz_voice), jnp.float32)
    xf12 = jax.random.normal(jax.random.PRNGKey(2), (Bo, input_sz_face), jnp.float32)
    xf22 = jax.random.normal(jax.random.PRNGKey(3), (Bo, input_sz_face), jnp.float32)
    out2 = jax.block_until_ready(
        voice_face_triplets_forward(xv2, xf12, xf22, params,
                                    compute_dtype=jnp.float32))
    ref2 = jax.block_until_ready(reference_forward(xv2, xf12, xf22, params))
    np.testing.assert_allclose(np.asarray(out2), np.asarray(ref2),
                               rtol=1e-3, atol=1e-3)

    assert out_f32.shape == (B, 1) and out_bf16.shape == (B, 1) and out2.shape == (Bo, 1)
    print("KERNEL_OK")
</pallas_src>

<mosaic_0001>
module attributes {stable_mosaic.version = 11 : i64} {
  func.func @_vf_triplets_kernel(%arg0: i32, %arg1: memref<8x128xf32, #tpu.memory_space<vmem>>, %arg2: memref<8x128xf32, #tpu.memory_space<vmem>>, %arg3: memref<256x512xf32, #tpu.memory_space<vmem>>, %arg4: memref<1x512xf32, #tpu.memory_space<vmem>>, %arg5: memref<256x128xf32, #tpu.memory_space<vmem>>, %arg6: memref<1x128xf32, #tpu.memory_space<vmem>>, %arg7: memref<1x64xf32, #tpu.memory_space<vmem>>, %arg8: memref<1x1xf32, #tpu.memory_space<vmem>>, %arg9: memref<8x1xf32, #tpu.memory_space<vmem>>) attributes {dimension_semantics = [#tpu.dimension_semantics<parallel>], iteration_bounds = array<i64: 1>, scalar_prefetch = 0 : i64, scratch_operands = 0 : i64, tpu.core_type = #tpu.core_type<tc>, window_params = [{transform_indices = @transform_0, window_bounds = array<i64: 8, 128>}, {transform_indices = @transform_1, window_bounds = array<i64: 8, 128>}, {pipeline_mode = #tpu.pipeline_mode<synchronous>, transform_indices = @transform_2, window_bounds = array<i64: 256, 512>}, {pipeline_mode = #tpu.pipeline_mode<synchronous>, transform_indices = @transform_3, window_bounds = array<i64: 1, 512>}, {pipeline_mode = #tpu.pipeline_mode<synchronous>, transform_indices = @transform_4, window_bounds = array<i64: 256, 128>}, {pipeline_mode = #tpu.pipeline_mode<synchronous>, transform_indices = @transform_5, window_bounds = array<i64: 1, 128>}, {pipeline_mode = #tpu.pipeline_mode<synchronous>, transform_indices = @transform_6, window_bounds = array<i64: 1, 64>}, {pipeline_mode = #tpu.pipeline_mode<synchronous>, transform_indices = @transform_7, window_bounds = array<i64: 1, 1>}, {transform_indices = @transform_8, window_bounds = array<i64: 8, 1>}]} {
    %c0 = arith.constant 0 : index
    %c0_0 = arith.constant 0 : index
    %0 = vector.load %arg1[%c0, %c0_0] : memref<8x128xf32, #tpu.memory_space<vmem>>, vector<8x128xf32>
    %c0_1 = arith.constant 0 : index
    %c0_2 = arith.constant 0 : index
    %1 = vector.load %arg2[%c0_1, %c0_2] : memref<8x128xf32, #tpu.memory_space<vmem>>, vector<8x128xf32>
    %2 = tpu.concatenate %0, %1 in 1 : vector<8x128xf32>, vector<8x128xf32> -> vector<8x256xf32>
    %c0_3 = arith.constant 0 : index
    %c0_4 = arith.constant 0 : index
    %3 = vector.load %arg3[%c0_3, %c0_4] : memref<256x512xf32, #tpu.memory_space<vmem>>, vector<256x512xf32>
    %cst = arith.constant dense<0.000000e+00> : vector<8x512xf32>
    %4 = tpu.matmul %2, %3, %cst {dimension_numbers = #tpu.dot_dimension_numbers<[1], [0], [0], [1], [0, 0, 1, 1], [], []>} : vector<8x256xf32>, vector<256x512xf32>, vector<8x512xf32> -> vector<8x512xf32>
    %c0_5 = arith.constant 0 : index
    %c0_6 = arith.constant 0 : index
    %5 = vector.load %arg4[%c0_5, %c0_6] : memref<1x512xf32, #tpu.memory_space<vmem>>, vector<1x512xf32>
    %6 = vector.broadcast %5 : vector<1x512xf32> to vector<8x512xf32>
    %7 = arith.addf %4, %6 : vector<8x512xf32>
    %8 = vector.extract_strided_slice %7 {offsets = [0, 0], sizes = [8, 256], strides = [1, 1]} : vector<8x512xf32> to vector<8x256xf32>
    %9 = vector.extract_strided_slice %7 {offsets = [0, 256], sizes = [8, 256], strides = [1, 1]} : vector<8x512xf32> to vector<8x256xf32>
    %10 = arith.maximumf %8, %9 : vector<8x256xf32>
    %cst_7 = arith.constant 0.000000e+00 : f32
    %11 = vector.broadcast %cst_7 : f32 to vector<8x256xf32>
    %12 = arith.maximumf %10, %11 : vector<8x256xf32>
    %c0_8 = arith.constant 0 : index
    %c0_9 = arith.constant 0 : index
    %13 = vector.load %arg5[%c0_8, %c0_9] : memref<256x128xf32, #tpu.memory_space<vmem>>, vector<256x128xf32>
    %cst_10 = arith.constant dense<0.000000e+00> : vector<8x128xf32>
    %14 = tpu.matmul %12, %13, %cst_10 {dimension_numbers = #tpu.dot_dimension_numbers<[1], [0], [0], [1], [0, 0, 1, 1], [], []>} : vector<8x256xf32>, vector<256x128xf32>, vector<8x128xf32> -> vector<8x128xf32>
    %c0_11 = arith.constant 0 : index
    %c0_12 = arith.constant 0 : index
    %15 = vector.load %arg6[%c0_11, %c0_12] : memref<1x128xf32, #tpu.memory_space<vmem>>, vector<1x128xf32>
    %16 = vector.broadcast %15 : vector<1x128xf32> to vector<8x128xf32>
    %17 = arith.addf %14, %16 : vector<8x128xf32>
    %18 = vector.extract_strided_slice %17 {offsets = [0, 0], sizes = [8, 64], strides = [1, 1]} : vector<8x128xf32> to vector<8x64xf32>
    %19 = vector.extract_strided_slice %17 {offsets = [0, 64], sizes = [8, 64], strides = [1, 1]} : vector<8x128xf32> to vector<8x64xf32>
    %20 = arith.maximumf %18, %19 : vector<8x64xf32>
    %cst_13 = arith.constant 0.000000e+00 : f32
    %21 = vector.broadcast %cst_13 : f32 to vector<8x64xf32>
    %22 = arith.maximumf %20, %21 : vector<8x64xf32>
    %c0_14 = arith.constant 0 : index
    %c0_15 = arith.constant 0 : index
    %23 = vector.load %arg7[%c0_14, %c0_15] : memref<1x64xf32, #tpu.memory_space<vmem>>, vector<1x64xf32>
    %24 = vector.broadcast %23 : vector<1x64xf32> to vector<8x64xf32>
    %25 = arith.mulf %22, %24 : vector<8x64xf32>
    %cst_16 = arith.constant dense<0.000000e+00> : vector<8xf32>
    %26 = vector.multi_reduction <add>, %25, %cst_16 [1] : vector<8x64xf32> to vector<8xf32>
    %27 = vector.shape_cast %26 : vector<8xf32> to vector<8x1xf32>
    %c0_17 = arith.constant 0 : index
    %c0_18 = arith.constant 0 : index
    %28 = vector.load %arg8[%c0_17, %c0_18] : memref<1x1xf32, #tpu.memory_space<vmem>>, vector<1x1xf32>
    %29 = vector.broadcast %28 : vector<1x1xf32> to vector<8x1xf32>
    %30 = arith.addf %27, %29 : vector<8x1xf32>
    %c0_19 = arith.constant 0 : index
    %c0_20 = arith.constant 0 : index
    %31 = vector.load %arg9[%c0_19, %c0_20] : memref<8x1xf32, #tpu.memory_space<vmem>>, vector<8x1xf32>
    tpu.vector_store %arg9[%c0_19, %c0_20], %30 {strides = array<i32>} : memref<8x1xf32, #tpu.memory_space<vmem>>, vector<8x1xf32>,
    return
  }
  func.func @transform_0(%arg0: i32) -> (i32, i32) {
    %c0_i32 = arith.constant 0 : i32
    %c0_i32_0 = arith.constant 0 : i32
    return %arg0, %c0_i32 : i32, i32
  }
  func.func @transform_1(%arg0: i32) -> (i32, i32) {
    %c0_i32 = arith.constant 0 : i32
    %c0_i32_0 = arith.constant 0 : i32
    return %arg0, %c0_i32 : i32, i32
  }
  func.func @transform_2(%arg0: i32) -> (i32, i32) {
    %c0_i32 = arith.constant 0 : i32
    %c0_i32_0 = arith.constant 0 : i32
    %c0_i32_1 = arith.constant 0 : i32
    return %c0_i32, %c0_i32_0 : i32, i32
  }
  func.func @transform_3(%arg0: i32) -> (i32, i32) {
    %c0_i32 = arith.constant 0 : i32
    %c0_i32_0 = arith.constant 0 : i32
    %c0_i32_1 = arith.constant 0 : i32
    return %c0_i32, %c0_i32_0 : i32, i32
  }
  func.func @transform_4(%arg0: i32) -> (i32, i32) {
    %c0_i32 = arith.constant 0 : i32
    %c0_i32_0 = arith.constant 0 : i32
    %c0_i32_1 = arith.constant 0 : i32
    return %c0_i32, %c0_i32_0 : i32, i32
  }
  func.func @transform_5(%arg0: i32) -> (i32, i32) {
    %c0_i32 = arith.constant 0 : i32
    %c0_i32_0 = arith.constant 0 : i32
    %c0_i32_1 = arith.constant 0 : i32
    return %c0_i32, %c0_i32_0 : i32, i32
  }
  func.func @transform_6(%arg0: i32) -> (i32, i32) {
    %c0_i32 = arith.constant 0 : i32
    %c0_i32_0 = arith.constant 0 : i32
    %c0_i32_1 = arith.constant 0 : i32
    return %c0_i32, %c0_i32_0 : i32, i32
  }
  func.func @transform_7(%arg0: i32) -> (i32, i32) {
    %c0_i32 = arith.constant 0 : i32
    %c0_i32_0 = arith.constant 0 : i32
    %c0_i32_1 = arith.constant 0 : i32
    return %c0_i32, %c0_i32_0 : i32, i32
  }
  func.func @transform_8(%arg0: i32) -> (i32, i32) {
    %c0_i32 = arith.constant 0 : i32
    %c0_i32_0 = arith.constant 0 : i32
    return %arg0, %c0_i32 : i32, i32
  }
}

</mosaic_0001>

<llo_original>
// kernel: tpu_custom_call.1
$region0: #{tpu_custom_call.1}
  #allocation0 [shape = 'u32[]', space=smem, size = 0x4, offset = 0x4, fixed_abs, tag = 'smem constant byte address 0x4 - core index']
  #allocation1 [shape = 'u32[144,128]{1,0:T(1,128)}', space=vmem, size = 0x12000, scoped, tag = 'internal scratch']
  #allocation2 [shape = 'f32[1,1]{1,0:T(1,128)S(1)}', space=vmem, size = 0x200, scoped, tag = 'scoped memory for tpu_custom_call.1']
  %s0 = inlined_call_operand.hbm [shape: f32[8,128], index: 0, kind: input, shape index: {}]
  %s1 = inlined_call_operand.hbm [shape: f32[8,128], index: 1, kind: input, shape index: {}]
  %s2 = inlined_call_operand.hbm [shape: f32[256,512], index: 2, kind: input, shape index: {}]
  %s3 = inlined_call_operand.vmem [shape: f32[1,512], index: 3, kind: input, shape index: {}]
  %s4 = inlined_call_operand.hbm [shape: f32[256,128], index: 4, kind: input, shape index: {}]
  %s5 = inlined_call_operand.vmem [shape: f32[1,128], index: 5, kind: input, shape index: {}]
  %s6 = inlined_call_operand.vmem [shape: f32[1,64], index: 6, kind: input, shape index: {}]
  %s7 = inlined_call_operand.<no memory space> [shape: f32[1,1], index: 7, kind: input, shape index: {}]
  %s8 = inlined_call_operand.vmem [shape: f32[8,1], index: 8, kind: output, shape index: {}]
  %s9 = sld [smem:[#allocation0]]
  $region58: #{tpu_custom_call.1} parent=0
    _
  %s11 = ssub.s32 1, %s9
  %s12 = scalar_select 0, %s11, %s9
  %v13 = vstv %s7
  %14 = vst [vmem:[#allocation2] sm:$0x1] %v13
  $region1: #{tpu_custom_call.1} parent=0
    #allocation3 [shape = 'u8[4096]{0}', space=vmem, size = 0x1000, scoped, tag = 'input window, operand 0, single buffered']
    #allocation4 [shape = 's32[1]{0}', space=sflag, size = 0x4, scoped, tag = 'scoped memory for tpu_custom_call.1']
    #allocation5 [shape = 'u8[4096]{0}', space=vmem, size = 0x1000, scoped, tag = 'input window, operand 1, single buffered']
    #allocation6 [shape = 's32[1]{0}', space=sflag, size = 0x4, scoped, tag = 'scoped memory for tpu_custom_call.1']
    #allocation7 [shape = 'u8[524288]{0}', space=vmem, size = 0x80000, scoped, tag = 'input window, operand 2, single buffered']
    #allocation8 [shape = 'u8[131072]{0}', space=vmem, size = 0x20000, scoped, tag = 'input window, operand 4, single buffered']
    #allocation9 [shape = 's32[1]{0}', space=sflag, size = 0x4, scoped, tag = 'scoped memory for tpu_custom_call.1']
    %15 = vsyncpa [#allocation4], 0
    %16 = vsyncpa [#allocation6], 0
    %17 = vsyncpa [#allocation9], 0
    // Predicated region
    $region2: #{tpu_custom_call.1} parent=1 // pred_check
      _
    $region3: #{tpu_custom_call.1} parent=1 // pred_check_branch
      %19 = sbr.rel (0) target = $region5
    $region4: #{tpu_custom_call.1} parent=1 // pred_region
      %s21 = ssub.s32 128, 128
      %22 = vsyncadd [#allocation4], %s21
      %s24 = sshll.u32 [#allocation3], 4
      %s25 = int_to_ptr.vmem [resolvable:$true] %s24
      %27 = dma.hbm_to_vmem [thread:$0]  %s0, 128, %s25, [#allocation4]
    $region5: #{tpu_custom_call.1} parent=1 // pred_fallthru
      _
    // Predicated region
    $region6: #{tpu_custom_call.1} parent=1 // pred_check
      _
    $region7: #{tpu_custom_call.1} parent=1 // pred_check_branch
      %29 = sbr.rel (0) target = $region9
    $region8: #{tpu_custom_call.1} parent=1 // pred_region
      %s31 = ssub.s32 128, 128
      %32 = vsyncadd [#allocation6], %s31
      %s34 = sshll.u32 [#allocation5], 4
      %s35 = int_to_ptr.vmem [resolvable:$true] %s34
      %37 = dma.hbm_to_vmem [thread:$0]  %s1, 128, %s35, [#allocation6]
    $region9: #{tpu_custom_call.1} parent=1 // pred_fallthru
      _
    // Predicated region
    $region10: #{tpu_custom_call.1} parent=1 // pred_check
      _
    $region11: #{tpu_custom_call.1} parent=1 // pred_check_branch
      %39 = sbr.rel (0) target = $region13
    $region12: #{tpu_custom_call.1} parent=1 // pred_region
      %s41 = ssub.s32 16384, 16384
      %42 = vsyncadd [#allocation6], %s41
      %s43 = sshll.u32 [#allocation7], 4
      %s44 = int_to_ptr.vmem [resolvable:$true] %s43
      %49 = dma.hbm_to_vmem [thread:$0]  %s2, 16384, %s44, [#allocation6], 512, 512, 32
    $region13: #{tpu_custom_call.1} parent=1 // pred_fallthru
      _
    // Predicated region
    $region14: #{tpu_custom_call.1} parent=1 // pred_check
      _
    $region15: #{tpu_custom_call.1} parent=1 // pred_check_branch
      %51 = sbr.rel (0) target = $region17
    $region16: #{tpu_custom_call.1} parent=1 // pred_region
      _
    $region17: #{tpu_custom_call.1} parent=1 // pred_fallthru
      _
    // Predicated region
    $region18: #{tpu_custom_call.1} parent=1 // pred_check
      _
    $region19: #{tpu_custom_call.1} parent=1 // pred_check_branch
      %53 = sbr.rel (0) target = $region21
    $region20: #{tpu_custom_call.1} parent=1 // pred_region
      %s55 = ssub.s32 4096, 4096
      %56 = vsyncadd [#allocation9], %s55
      %s57 = sshll.u32 [#allocation8], 4
      %s58 = int_to_ptr.vmem [resolvable:$true] %s57
      %63 = dma.hbm_to_vmem [thread:$0]  %s4, 4096, %s58, [#allocation9], 128, 128, 8
    $region21: #{tpu_custom_call.1} parent=1 // pred_fallthru
      _
    // Predicated region
    $region22: #{tpu_custom_call.1} parent=1 // pred_check
      _
    $region23: #{tpu_custom_call.1} parent=1 // pred_check_branch
      %65 = sbr.rel (0) target = $region25
    $region24: #{tpu_custom_call.1} parent=1 // pred_region
      _
    $region25: #{tpu_custom_call.1} parent=1 // pred_fallthru
      _
    // Predicated region
    $region26: #{tpu_custom_call.1} parent=1 // pred_check
      _
    $region27: #{tpu_custom_call.1} parent=1 // pred_check_branch
      %67 = sbr.rel (0) target = $region29
    $region28: #{tpu_custom_call.1} parent=1 // pred_region
      _
    $region29: #{tpu_custom_call.1} parent=1 // pred_fallthru
      _
    // Predicated region
    $region30: #{tpu_custom_call.1} parent=1 // pred_check
      _
    $region31: #{tpu_custom_call.1} parent=1 // pred_check_branch
      %69 = sbr.rel (0) target = $region33
    $region32: #{tpu_custom_call.1} parent=1 // pred_region
      _
    $region33: #{tpu_custom_call.1} parent=1 // pred_fallthru
      _
    // Predicated region
    $region34: #{tpu_custom_call.1} parent=1 // pred_check
      _
    $region35: #{tpu_custom_call.1} parent=1 // pred_check_branch
      %71 = sbr.rel (0) target = $region37
    $region36: #{tpu_custom_call.1} parent=1 // pred_region
      %72 = dma.done [#allocation4], 128
    $region37: #{tpu_custom_call.1} parent=1 // pred_fallthru
      _
    // Predicated region
    $region38: #{tpu_custom_call.1} parent=1 // pred_check
      _
    $region39: #{tpu_custom_call.1} parent=1 // pred_check_branch
      %74 = sbr.rel (0) target = $region41
    $region40: #{tpu_custom_call.1} parent=1 // pred_region
      %75 = dma.done [#allocation6], 128
    $region41: #{tpu_custom_call.1} parent=1 // pred_fallthru
      _
    // Predicated region
    $region42: #{tpu_custom_call.1} parent=1 // pred_check
      _
    $region43: #{tpu_custom_call.1} parent=1 // pred_check_branch
      %77 = sbr.rel (0) target = $region45
    $region44: #{tpu_custom_call.1} parent=1 // pred_region
      %78 = dma.done [#allocation6], 16384
    $region45: #{tpu_custom_call.1} parent=1 // pred_fallthru
      _
    // Predicated region
    $region46: #{tpu_custom_call.1} parent=1 // pred_check
      _
    $region47: #{tpu_custom_call.1} parent=1 // pred_check_branch
      %80 = sbr.rel (0) target = $region49
    $region48: #{tpu_custom_call.1} parent=1 // pred_region
      %81 = dma.done [#allocation9], 4096
    $region49: #{tpu_custom_call.1} parent=1 // pred_fallthru
      _
    %v82 = vld [vmem:[#allocation3] sm:$0xff]
    %v83 = vld [vmem:[#allocation5] sm:$0xff]
    %v84 = vld [vmem:[#allocation7] sm:$0xff]
    %v85 = vld [vmem:[#allocation7 + $0x8] sm:$0xff]
    %v86 = vld [vmem:[#allocation7 + $0x10] sm:$0xff]
    %v87 = vld [vmem:[#allocation7 + $0x18] sm:$0xff]
    %v88 = vld [vmem:[#allocation7 + $0x20] sm:$0xff]
    %v89 = vld [vmem:[#allocation7 + $0x28] sm:$0xff]
    %v90 = vld [vmem:[#allocation7 + $0x30] sm:$0xff]
    %v91 = vld [vmem:[#allocation7 + $0x38] sm:$0xff]
    %v92 = vld [vmem:[#allocation7 + $0x40] sm:$0xff]
    %v93 = vld [vmem:[#allocation7 + $0x48] sm:$0xff]
    %v94 = vld [vmem:[#allocation7 + $0x50] sm:$0xff]
    %v95 = vld [vmem:[#allocation7 + $0x58] sm:$0xff]
    %v96 = vld [vmem:[#allocation7 + $0x60] sm:$0xff]
    %v97 = vld [vmem:[#allocation7 + $0x68] sm:$0xff]
    %v98 = vld [vmem:[#allocation7 + $0x70] sm:$0xff]
    %v99 = vld [vmem:[#allocation7 + $0x78] sm:$0xff]
    %v100 = vld [vmem:[#allocation7 + $0x80] sm:$0xff]
    %v101 = vld [vmem:[#allocation7 + $0x88] sm:$0xff]
    %v102 = vld [vmem:[#allocation7 + $0x90] sm:$0xff]
    %v103 = vld [vmem:[#allocation7 + $0x98] sm:$0xff]
    %v104 = vld [vmem:[#allocation7 + $0xa0] sm:$0xff]
    %v105 = vld [vmem:[#allocation7 + $0xa8] sm:$0xff]
    %v106 = vld [vmem:[#allocation7 + $0xb0] sm:$0xff]
    %v107 = vld [vmem:[#allocation7 + $0xb8] sm:$0xff]
    %v108 = vld [vmem:[#allocation7 + $0xc0] sm:$0xff]
    %v109 = vld [vmem:[#allocation7 + $0xc8] sm:$0xff]
    %v110 = vld [vmem:[#allocation7 + $0xd0] sm:$0xff]
    %v111 = vld [vmem:[#allocation7 + $0xd8] sm:$0xff]
    %v112 = vld [vmem:[#allocation7 + $0xe0] sm:$0xff]
    %v113 = vld [vmem:[#allocation7 + $0xe8] sm:$0xff]
    %v114 = vld [vmem:[#allocation7 + $0xf0] sm:$0xff]
    %v115 = vld [vmem:[#allocation7 + $0xf8] sm:$0xff]
    %v116 = vld [vmem:[#allocation7 + $0x100] sm:$0xff]
    %v117 = vld [vmem:[#allocation7 + $0x108] sm:$0xff]
    %v118 = vld [vmem:[#allocation7 + $0x110] sm:$0xff]
    %v119 = vld [vmem:[#allocation7 + $0x118] sm:$0xff]
    %v120 = vld [vmem:[#allocation7 + $0x120] sm:$0xff]
    %v121 = vld [vmem:[#allocation7 + $0x128] sm:$0xff]
    %v122 = vld [vmem:[#allocation7 + $0x130] sm:$0xff]
    %v123 = vld [vmem:[#allocation7 + $0x138] sm:$0xff]
    %v124 = vld [vmem:[#allocation7 + $0x140] sm:$0xff]
    %v125 = vld [vmem:[#allocation7 + $0x148] sm:$0xff]
    %v126 = vld [vmem:[#allocation7 + $0x150] sm:$0xff]
    %v127 = vld [vmem:[#allocation7 + $0x158] sm:$0xff]
    %v128 = vld [vmem:[#allocation7 + $0x160] sm:$0xff]
    %v129 = vld [vmem:[#allocation7 + $0x168] sm:$0xff]
    %v130 = vld [vmem:[#allocation7 + $0x170] sm:$0xff]
    %v131 = vld [vmem:[#allocation7 + $0x178] sm:$0xff]
    %v132 = vld [vmem:[#allocation7 + $0x180] sm:$0xff]
    %v133 = vld [vmem:[#allocation7 + $0x188] sm:$0xff]
    %v134 = vld [vmem:[#allocation7 + $0x190] sm:$0xff]
    %v135 = vld [vmem:[#allocation7 + $0x198] sm:$0xff]
    %v136 = vld [vmem:[#allocation7 + $0x1a0] sm:$0xff]
    %v137 = vld [vmem:[#allocation7 + $0x1a8] sm:$0xff]
    %v138 = vld [vmem:[#allocation7 + $0x1b0] sm:$0xff]
    %v139 = vld [vmem:[#allocation7 + $0x1b8] sm:$0xff]
    %v140 = vld [vmem:[#allocation7 + $0x1c0] sm:$0xff]
    %v141 = vld [vmem:[#allocation7 + $0x1c8] sm:$0xff]
    %v142 = vld [vmem:[#allocation7 + $0x1d0] sm:$0xff]
    %v143 = vld [vmem:[#allocation7 + $0x1d8] sm:$0xff]
    %v144 = vld [vmem:[#allocation7 + $0x1e0] sm:$0xff]
    %v145 = vld [vmem:[#allocation7 + $0x1e8] sm:$0xff]
    %v146 = vld [vmem:[#allocation7 + $0x1f0] sm:$0xff]
    %v147 = vld [vmem:[#allocation7 + $0x1f8] sm:$0xff]
    %v148 = vld [vmem:[#allocation7 + $0x200] sm:$0xff]
    %v149 = vld [vmem:[#allocation7 + $0x208] sm:$0xff]
    %v150 = vld [vmem:[#allocation7 + $0x210] sm:$0xff]
    %v151 = vld [vmem:[#allocation7 + $0x218] sm:$0xff]
    %v152 = vld [vmem:[#allocation7 + $0x220] sm:$0xff]
    %v153 = vld [vmem:[#allocation7 + $0x228] sm:$0xff]
    %v154 = vld [vmem:[#allocation7 + $0x230] sm:$0xff]
    %v155 = vld [vmem:[#allocation7 + $0x238] sm:$0xff]
    %v156 = vld [vmem:[#allocation7 + $0x240] sm:$0xff]
    %v157 = vld [vmem:[#allocation7 + $0x248] sm:$0xff]
    %v158 = vld [vmem:[#allocation7 + $0x250] sm:$0xff]
    %v159 = vld [vmem:[#allocation7 + $0x258] sm:$0xff]
    %v160 = vld [vmem:[#allocation7 + $0x260] sm:$0xff]
    %v161 = vld [vmem:[#allocation7 + $0x268] sm:$0xff]
    %v162 = vld [vmem:[#allocation7 + $0x270] sm:$0xff]
    %v163 = vld [vmem:[#allocation7 + $0x278] sm:$0xff]
    %v164 = vld [vmem:[#allocation7 + $0x280] sm:$0xff]
    %v165 = vld [vmem:[#allocation7 + $0x288] sm:$0xff]
    %v166 = vld [vmem:[#allocation7 + $0x290] sm:$0xff]
    %v167 = vld [vmem:[#allocation7 + $0x298] sm:$0xff]
    %v168 = vld [vmem:[#allocation7 + $0x2a0] sm:$0xff]
    %v169 = vld [vmem:[#allocation7 + $0x2a8] sm:$0xff]
    %v170 = vld [vmem:[#allocation7 + $0x2b0] sm:$0xff]
    %v171 = vld [vmem:[#allocation7 + $0x2b8] sm:$0xff]
    %v172 = vld [vmem:[#allocation7 + $0x2c0] sm:$0xff]
    %v173 = vld [vmem:[#allocation7 + $0x2c8] sm:$0xff]
    %v174 = vld [vmem:[#allocation7 + $0x2d0] sm:$0xff]
    %v175 = vld [vmem:[#allocation7 + $0x2d8] sm:$0xff]
    %v176 = vld [vmem:[#allocation7 + $0x2e0] sm:$0xff]
    %v177 = vld [vmem:[#allocation7 + $0x2e8] sm:$0xff]
    %v178 = vld [vmem:[#allocation7 + $0x2f0] sm:$0xff]
    %v179 = vld [vmem:[#allocation7 + $0x2f8] sm:$0xff]
    %v180 = vld [vmem:[#allocation7 + $0x300] sm:$0xff]
    %v181 = vld [vmem:[#allocation7 + $0x308] sm:$0xff]
    %v182 = vld [vmem:[#allocation7 + $0x310] sm:$0xff]
    %v183 = vld [vmem:[#allocation7 + $0x318] sm:$0xff]
    %v184 = vld [vmem:[#allocation7 + $0x320] sm:$0xff]
    %v185 = vld [vmem:[#allocation7 + $0x328] sm:$0xff]
    %v186 = vld [vmem:[#allocation7 + $0x330] sm:$0xff]
    %v187 = vld [vmem:[#allocation7 + $0x338] sm:$0xff]
    %v188 = vld [vmem:[#allocation7 + $0x340] sm:$0xff]
    %v189 = vld [vmem:[#allocation7 + $0x348] sm:$0xff]
    %v190 = vld [vmem:[#allocation7 + $0x350] sm:$0xff]
    %v191 = vld [vmem:[#allocation7 + $0x358] sm:$0xff]
    %v192 = vld [vmem:[#allocation7 + $0x360] sm:$0xff]
    %v193 = vld [vmem:[#allocation7 + $0x368] sm:$0xff]
    %v194 = vld [vmem:[#allocation7 + $0x370] sm:$0xff]
    %v195 = vld [vmem:[#allocation7 + $0x378] sm:$0xff]
    %v196 = vld [vmem:[#allocation7 + $0x380] sm:$0xff]
    %v197 = vld [vmem:[#allocation7 + $0x388] sm:$0xff]
    %v198 = vld [vmem:[#allocation7 + $0x390] sm:$0xff]
    %v199 = vld [vmem:[#allocation7 + $0x398] sm:$0xff]
    %v200 = vld [vmem:[#allocation7 + $0x3a0] sm:$0xff]
    %v201 = vld [vmem:[#allocation7 + $0x3a8] sm:$0xff]
    %v202 = vld [vmem:[#allocation7 + $0x3b0] sm:$0xff]
    %v203 = vld [vmem:[#allocation7 + $0x3b8] sm:$0xff]
    %v204 = vld [vmem:[#allocation7 + $0x3c0] sm:$0xff]
    %v205 = vld [vmem:[#allocation7 + $0x3c8] sm:$0xff]
    %v206 = vld [vmem:[#allocation7 + $0x3d0] sm:$0xff]
    %v207 = vld [vmem:[#allocation7 + $0x3d8] sm:$0xff]
    %v208 = vld [vmem:[#allocation7 + $0x3e0] sm:$0xff]
    %v209 = vld [vmem:[#allocation7 + $0x3e8] sm:$0xff]
    %v210 = vld [vmem:[#allocation7 + $0x3f0] sm:$0xff]
    %v211 = vld [vmem:[#allocation7 + $0x3f8] sm:$0xff]
    %v212 = vld [vmem:[%s3] sm:$0xf]
    %v214 = vlaneseq
    %v215 = vshrl.u32 %v214, 7
    %v216 = vsub.s32 0, %v215
    %v217 = vrot.slane %v212, %v216
    %v218 = vlaneseq
    %v219 = vshrl.u32 %v218, 7
    %v220 = vsub.s32 1, %v219
    %v221 = vrot.slane %v212, %v220
    %v222 = vlaneseq
    %v223 = vshrl.u32 %v222, 7
    %v224 = vsub.s32 2, %v223
    %v225 = vrot.slane %v212, %v224
    %v226 = vlaneseq
    %v227 = vshrl.u32 %v226, 7
    %v228 = vsub.s32 3, %v227
    %v229 = vrot.slane %v212, %v228
    %234 = vmatprep.subr.mxu0 %v85
    %235 = vmatpush1.msra.mxu0 %v84
    %236 = vmatprep.subr.mxu0 %v89
    %237 = vmatpush1.msra.mxu0 %v88
    %238 = vmatprep.subr.mxu0 %v93
    %239 = vmatpush1.msra.mxu0 %v92
    %240 = vmatprep.subr.mxu0 %v97
    %241 = vmatpush1.msra.mxu0 %v96
    %242 = vmatprep.subr.mxu0 %v101
    %243 = vmatpush1.msra.mxu0 %v100
    %244 = vmatprep.subr.mxu0 %v105
    %245 = vmatpush1.msra.mxu0 %v104
    %246 = vmatprep.subr.mxu0 %v109
    %247 = vmatpush1.msra.mxu0 %v108
    %248 = vmatprep.subr.mxu0 %v113
    %249 = vmatpush1.msra.mxu0 %v112
    %250 = vmatprep.subr.mxu0 %v117
    %251 = vmatpush1.msra.mxu0 %v116
    %252 = vmatprep.subr.mxu0 %v121
    %253 = vmatpush1.msra.mxu0 %v120
    %254 = vmatprep.subr.mxu0 %v125
    %255 = vmatpush1.msra.mxu0 %v124
    %256 = vmatprep.subr.mxu0 %v129
    %257 = vmatpush1.msra.mxu0 %v128
    %258 = vmatprep.subr.mxu0 %v133
    %259 = vmatpush1.msra.mxu0 %v132
    %260 = vmatprep.subr.mxu0 %v137
    %261 = vmatpush1.msra.mxu0 %v136
    %262 = vmatprep.subr.mxu0 %v141
    %263 = vmatpush1.msra.mxu0 %v140
    %264 = vmatprep.subr.mxu0 %v145
    %265 = vmatpush1.msra.mxu0 %v144
    %266 = vmatprep.subr.mxu0 %v149
    %267 = vmatpush1.msra.mxu0 %v148
    %268 = vmatprep.subr.mxu0 %v153
    %269 = vmatpush1.msra.mxu0 %v152
    %270 = vmatprep.subr.mxu0 %v157
    %271 = vmatpush1.msra.mxu0 %v156
    %272 = vmatprep.subr.mxu0 %v161
    %273 = vmatpush1.msra.mxu0 %v160
    %274 = vmatprep.subr.mxu0 %v165
    %275 = vmatpush1.msra.mxu0 %v164
    %276 = vmatprep.subr.mxu0 %v169
    %277 = vmatpush1.msra.mxu0 %v168
    %278 = vmatprep.subr.mxu0 %v173
    %279 = vmatpush1.msra.mxu0 %v172
    %280 = vmatprep.subr.mxu0 %v177
    %281 = vmatpush1.msra.mxu0 %v176
    %282 = vmatprep.subr.mxu0 %v181
    %283 = vmatpush1.msra.mxu0 %v180
    %284 = vmatprep.subr.mxu0 %v185
    %285 = vmatpush1.msra.mxu0 %v184
    %286 = vmatprep.subr.mxu0 %v189
    %287 = vmatpush1.msra.mxu0 %v188
    %288 = vmatprep.subr.mxu0 %v193
    %289 = vmatpush1.msra.mxu0 %v192
    %290 = vmatprep.subr.mxu0 %v197
    %291 = vmatpush1.msra.mxu0 %v196
    %292 = vmatprep.subr.mxu0 %v201
    %293 = vmatpush1.msra.mxu0 %v200
    %294 = vmatprep.subr.mxu0 %v205
    %295 = vmatpush1.msra.mxu0 %v204
    %296 = vmatprep.subr.mxu0 %v209
    %297 = vmatpush1.msra.mxu0 %v208
    %298 = vmatprep.mubr.f32.mxu0 %v83
    %299 = vmatmul.mubr.f32.gmra.mrb[0].mxu0 %v82
    %v300 = vpop.f32.mrb[0].mxu0
    %v301 = vadd.f32 %v217, %v300
    %v302 = vpop.f32.mrb[0].mxu0
    %v303 = vadd.f32 %v221, %v302
    %304 = vdwg.mxu0
    %305 = vmatprep.subr.mxu0 %v87
    %306 = vmatpush1.msra.mxu0 %v86
    %307 = vmatprep.subr.mxu0 %v91
    %308 = vmatpush1.msra.mxu0 %v90
    %309 = vmatprep.subr.mxu0 %v95
    %310 = vmatpush1.msra.mxu0 %v94
    %311 = vmatprep.subr.mxu0 %v99
    %312 = vmatpush1.msra.mxu0 %v98
    %313 = vmatprep.subr.mxu0 %v103
    %314 = vmatpush1.msra.mxu0 %v102
    %315 = vmatprep.subr.mxu0 %v107
    %316 = vmatpush1.msra.mxu0 %v106
    %317 = vmatprep.subr.mxu0 %v111
    %318 = vmatpush1.msra.mxu0 %v110
    %319 = vmatprep.subr.mxu0 %v115
    %320 = vmatpush1.msra.mxu0 %v114
    %321 = vmatprep.subr.mxu0 %v119
    %322 = vmatpush1.msra.mxu0 %v118
    %323 = vmatprep.subr.mxu0 %v123
    %324 = vmatpush1.msra.mxu0 %v122
    %325 = vmatprep.subr.mxu0 %v127
    %326 = vmatpush1.msra.mxu0 %v126
    %327 = vmatprep.subr.mxu0 %v131
    %328 = vmatpush1.msra.mxu0 %v130
    %329 = vmatprep.subr.mxu0 %v135
    %330 = vmatpush1.msra.mxu0 %v134
    %331 = vmatprep.subr.mxu0 %v139
    %332 = vmatpush1.msra.mxu0 %v138
    %333 = vmatprep.subr.mxu0 %v143
    %334 = vmatpush1.msra.mxu0 %v142
    %335 = vmatprep.subr.mxu0 %v147
    %336 = vmatpush1.msra.mxu0 %v146
    %337 = vmatprep.subr.mxu0 %v151
    %338 = vmatpush1.msra.mxu0 %v150
    %339 = vmatprep.subr.mxu0 %v155
    %340 = vmatpush1.msra.mxu0 %v154
    %341 = vmatprep.subr.mxu0 %v159
    %342 = vmatpush1.msra.mxu0 %v158
    %343 = vmatprep.subr.mxu0 %v163
    %344 = vmatpush1.msra.mxu0 %v162
    %345 = vmatprep.subr.mxu0 %v167
    %346 = vmatpush1.msra.mxu0 %v166
    %347 = vmatprep.subr.mxu0 %v171
    %348 = vmatpush1.msra.mxu0 %v170
    %349 = vmatprep.subr.mxu0 %v175
    %350 = vmatpush1.msra.mxu0 %v174
    %351 = vmatprep.subr.mxu0 %v179
    %352 = vmatpush1.msra.mxu0 %v178
    %353 = vmatprep.subr.mxu0 %v183
    %354 = vmatpush1.msra.mxu0 %v182
    %355 = vmatprep.subr.mxu0 %v187
    %356 = vmatpush1.msra.mxu0 %v186
    %357 = vmatprep.subr.mxu0 %v191
    %358 = vmatpush1.msra.mxu0 %v190
    %359 = vmatprep.subr.mxu0 %v195
    %360 = vmatpush1.msra.mxu0 %v194
    %361 = vmatprep.subr.mxu0 %v199
    %362 = vmatpush1.msra.mxu0 %v198
    %363 = vmatprep.subr.mxu0 %v203
    %364 = vmatpush1.msra.mxu0 %v202
    %365 = vmatprep.subr.mxu0 %v207
    %366 = vmatpush1.msra.mxu0 %v206
    %367 = vmatprep.subr.mxu0 %v211
    %368 = vmatpush1.msra.mxu0 %v210
    %369 = vmatprep.mubr.f32.mxu0 %v83
    %370 = vmatmul.mubr.f32.gmra.mrb[0].mxu0 %v82
    %v371 = vpop.f32.mrb[0].mxu0
    %v372 = vadd.f32 %v225, %v371
    %v373 = vpop.f32.mrb[0].mxu0
    %v374 = vadd.f32 %v229, %v373
    %375 = vdwg.mxu0
    %v376 = vmax.f32 %v301, %v372
    %v377 = vmax.f32 %v303, %v374
    %v378 = vmax.f32 %v376, 0.0
    %v379 = vmax.f32 %v377, 0.0
    %v380 = vld [vmem:[#allocation8] sm:$0xff]
    %v381 = vld [vmem:[#allocation8 + $0x8] sm:$0xff]
    %v382 = vld [vmem:[#allocation8 + $0x10] sm:$0xff]
    %v383 = vld [vmem:[#allocation8 + $0x18] sm:$0xff]
    %v384 = vld [vmem:[#allocation8 + $0x20] sm:$0xff]
    %v385 = vld [vmem:[#allocation8 + $0x28] sm:$0xff]
    %v386 = vld [vmem:[#allocation8 + $0x30] sm:$0xff]
    %v387 = vld [vmem:[#allocation8 + $0x38] sm:$0xff]
    %v388 = vld [vmem:[#allocation8 + $0x40] sm:$0xff]
    %v389 = vld [vmem:[#allocation8 + $0x48] sm:$0xff]
    %v390 = vld [vmem:[#allocation8 + $0x50] sm:$0xff]
    %v391 = vld [vmem:[#allocation8 + $0x58] sm:$0xff]
    %v392 = vld [vmem:[#allocation8 + $0x60] sm:$0xff]
    %v393 = vld [vmem:[#allocation8 + $0x68] sm:$0xff]
    %v394 = vld [vmem:[#allocation8 + $0x70] sm:$0xff]
    %v395 = vld [vmem:[#allocation8 + $0x78] sm:$0xff]
    %v396 = vld [vmem:[#allocation8 + $0x80] sm:$0xff]
    %v397 = vld [vmem:[#allocation8 + $0x88] sm:$0xff]
    %v398 = vld [vmem:[#allocation8 + $0x90] sm:$0xff]
    %v399 = vld [vmem:[#allocation8 + $0x98] sm:$0xff]
    %v400 = vld [vmem:[#allocation8 + $0xa0] sm:$0xff]
    %v401 = vld [vmem:[#allocation8 + $0xa8] sm:$0xff]
    %v402 = vld [vmem:[#allocation8 + $0xb0] sm:$0xff]
    %v403 = vld [vmem:[#allocation8 + $0xb8] sm:$0xff]
    %v404 = vld [vmem:[#allocation8 + $0xc0] sm:$0xff]
    %v405 = vld [vmem:[#allocation8 + $0xc8] sm:$0xff]
    %v406 = vld [vmem:[#allocation8 + $0xd0] sm:$0xff]
    %v407 = vld [vmem:[#allocation8 + $0xd8] sm:$0xff]
    %v408 = vld [vmem:[#allocation8 + $0xe0] sm:$0xff]
    %v409 = vld [vmem:[#allocation8 + $0xe8] sm:$0xff]
    %v410 = vld [vmem:[#allocation8 + $0xf0] sm:$0xff]
    %v411 = vld [vmem:[#allocation8 + $0xf8] sm:$0xff]
    %v412 = vld [vmem:[%s5] sm:$0x1]
    %v414 = vlaneseq
    %v415 = vshrl.u32 %v414, 7
    %v416 = vsub.s32 0, %v415
    %v417 = vrot.slane %v412, %v416
    %419 = vmatprep.subr.mxu0 0.0
    %420 = vmatpush1.msra.mxu0 %v380
    %421 = vmatprep.subr.mxu0 0.0
    %422 = vmatpush1.msra.mxu0 %v381
    %423 = vmatprep.subr.mxu0 0.0
    %424 = vmatpush1.msra.mxu0 %v382
    %425 = vmatprep.subr.mxu0 0.0
    %426 = vmatpush1.msra.mxu0 %v383
    %427 = vmatprep.subr.mxu0 0.0
    %428 = vmatpush1.msra.mxu0 %v384
    %429 = vmatprep.subr.mxu0 0.0
    %430 = vmatpush1.msra.mxu0 %v385
    %431 = vmatprep.subr.mxu0 0.0
    %432 = vmatpush1.msra.mxu0 %v386
    %433 = vmatprep.subr.mxu0 0.0
    %434 = vmatpush1.msra.mxu0 %v387
    %435 = vmatprep.subr.mxu0 0.0
    %436 = vmatpush1.msra.mxu0 %v388
    %437 = vmatprep.subr.mxu0 0.0
    %438 = vmatpush1.msra.mxu0 %v389
    %439 = vmatprep.subr.mxu0 0.0
    %440 = vmatpush1.msra.mxu0 %v390
    %441 = vmatprep.subr.mxu0 0.0
    %442 = vmatpush1.msra.mxu0 %v391
    %443 = vmatprep.subr.mxu0 0.0
    %444 = vmatpush1.msra.mxu0 %v392
    %445 = vmatprep.subr.mxu0 0.0
    %446 = vmatpush1.msra.mxu0 %v393
    %447 = vmatprep.subr.mxu0 0.0
    %448 = vmatpush1.msra.mxu0 %v394
    %449 = vmatprep.subr.mxu0 0.0
    %450 = vmatpush1.msra.mxu0 %v395
    %451 = vmatprep.subr.mxu0 0.0
    %452 = vmatpush1.msra.mxu0 %v396
    %453 = vmatprep.subr.mxu0 0.0
    %454 = vmatpush1.msra.mxu0 %v397
    %455 = vmatprep.subr.mxu0 0.0
    %456 = vmatpush1.msra.mxu0 %v398
    %457 = vmatprep.subr.mxu0 0.0
    %458 = vmatpush1.msra.mxu0 %v399
    %459 = vmatprep.subr.mxu0 0.0
    %460 = vmatpush1.msra.mxu0 %v400
    %461 = vmatprep.subr.mxu0 0.0
    %462 = vmatpush1.msra.mxu0 %v401
    %463 = vmatprep.subr.mxu0 0.0
    %464 = vmatpush1.msra.mxu0 %v402
    %465 = vmatprep.subr.mxu0 0.0
    %466 = vmatpush1.msra.mxu0 %v403
    %467 = vmatprep.subr.mxu0 0.0
    %468 = vmatpush1.msra.mxu0 %v404
    %469 = vmatprep.subr.mxu0 0.0
    %470 = vmatpush1.msra.mxu0 %v405
    %471 = vmatprep.subr.mxu0 0.0
    %472 = vmatpush1.msra.mxu0 %v406
    %473 = vmatprep.subr.mxu0 0.0
    %474 = vmatpush1.msra.mxu0 %v407
    %475 = vmatprep.subr.mxu0 0.0
    %476 = vmatpush1.msra.mxu0 %v408
    %477 = vmatprep.subr.mxu0 0.0
    %478 = vmatpush1.msra.mxu0 %v409
    %479 = vmatprep.subr.mxu0 0.0
    %480 = vmatpush1.msra.mxu0 %v410
    %481 = vmatprep.subr.mxu0 0.0
    %482 = vmatpush1.msra.mxu0 %v411
    %483 = vmatprep.mubr.f32.mxu0 %v379
    %484 = vmatmul.mubr.f32.gmra.mrb[0].mxu0 %v378
    %v485 = vpop.f32.mrb[0].mxu0
    %v486 = vadd.f32 %v417, %v485
    %v487 = vpop.f32.mrb[0].mxu0
    %488 = vdwg.mxu0
    %490 = vrot.lane.b32.xlu0 %v486, 64
    %v491 = vpop.permute.xlu0 %490
    %v493 = vmax.f32 %v486, %v491
    %v494 = vmax.f32 %v493, 0.0
    %v495 = vld [vmem:[%s6] sm:$0x1]
    %v497 = vlaneseq
    %v498 = vshrl.u32 %v497, 7
    %v499 = vsub.s32 0, %v498
    %v500 = vrot.slane %v495, %v499
    %v502 = vmul.f32 %v494, %v500
    %vm503 = vcmask 523264
    %v504 = vsel %vm503, %v502, 0.0
    %505 = vadd.xlane.f32.xlu0 %v504
    %v506 = vpop.xlane.xlu0 %505
    %v507 = vld [vmem:[#allocation2] sm:$0x1]
    %v509 = vlaneseq
    %v510 = vshrl.u32 %v509, 7
    %v511 = vsub.s32 0, %v510
    %v512 = vrot.slane %v507, %v511
    %v514 = vadd.f32 %v506, %v512
    %vm515 = vcmask 7168
    %516 = vst.msk [vmem:[%s8] sm:$0xff] %vm515, %v514
    // Predicated region
    $region50: #{tpu_custom_call.1} parent=1 // pred_check
      _
    $region51: #{tpu_custom_call.1} parent=1 // pred_check_branch
      %518 = sbr.rel (0) target = $region53
    $region52: #{tpu_custom_call.1} parent=1 // pred_region
      _
    $region53: #{tpu_custom_call.1} parent=1 // pred_fallthru
      _
    // Predicated region
    $region54: #{tpu_custom_call.1} parent=1 // pred_check
      _
    $region55: #{tpu_custom_call.1} parent=1 // pred_check_branch
      %520 = sbr.rel (0) target = $region57
    $region56: #{tpu_custom_call.1} parent=1 // pred_region
      _
    $region57: #{tpu_custom_call.1} parent=1 // pred_fallthru
      _
    %521 = vsyncpa [#allocation4], 1
    %522 = vsyncpa [#allocation6], 1
    %523 = vsyncpa [#allocation9], 1

</llo_original>
